<compile_context>
chip_gen: v5e
topology: v5e:2x2
jax: 0.10.0
libtpu: 0.0.40
codegen_flags: <defaults>
</compile_context>

<pallas_src>
import functools

import jax
import jax.numpy as jnp
from jax.experimental import pallas as pl
from jax.experimental.pallas import tpu as pltpu


def _highway_kernel(x_ref, w_ref, b_ref, o_ref, *, size, n_layers):
    """One token-tile grid step; the layer loop runs in-kernel on resident weights.

    x_ref : (D,  tL)    input tile (channels x tokens)
    w_ref : (n, 2D, D)  resident fused weights [W_lin ; W_gate], PyTorch (out, in)
    b_ref : (n, 2D, 1)  resident fused biases (f32)
    o_ref : (D,  tL)    output tile
    """
    h = x_ref[...].astype(jnp.float32)                     # (D, tL) f32 carry
    for i in range(n_layers):          # static unroll; highway stacks are shallow
        w = w_ref[i]                                       # (2D, D)
        b = b_ref[i]                                       # (2D, 1) f32
        # Fused (linear, gate) matmul on the MXU: (2D, D) @ (D, tL) -> (2D, tL).
        z = jnp.dot(w, h.astype(w.dtype),
                    preferred_element_type=jnp.float32) + b
        nonlinear = jnp.maximum(z[:size, :], 0.0)          # relu(linear)
        gate = jax.nn.sigmoid(z[size:, :])                 # sigmoid(gate)
        h = h + gate * (nonlinear - h)                     # == gate*nl + (1-gate)*h
    o_ref[...] = h.astype(o_ref.dtype)


def fuse_highway_params(w_lin, b_lin, w_gate, b_gate, matmul_dtype=None):
    """Fuse per-layer (linear, gate) Linears into (n, 2D, D) weights + (n, 2D, 1) bias.

    Call once outside the per-step path (not per forward call).  Optionally
    downcast the matmul operand (e.g. jnp.bfloat16 on v6e/v7x); biases and
    accumulation stay f32.
    """
    w_cat = jnp.concatenate([w_lin, w_gate], axis=1)                 # (n, 2D, D)
    b_cat = jnp.concatenate([b_lin, b_gate], axis=1)[..., None]      # (n, 2D, 1)
    b_cat = b_cat.astype(jnp.float32)
    if matmul_dtype is not None:
        w_cat = w_cat.astype(matmul_dtype)
    return w_cat, b_cat


def _pick_token_tile(n_tokens, d, in_bytes, out_bytes,
                     budget_bytes=8 << 20, cap=4096):
    """Largest 128-multiple token tile fitting a per-step VMEM budget.

    Budget covers double-buffered x + out tiles plus the f32 working copy.
    """
    per_token = d * (2 * in_bytes + 2 * out_bytes + 4)
    t = (budget_bytes // per_token // 128) * 128
    t = int(min(cap, max(128, t)))
    n_pad128 = -(-n_tokens // 128) * 128
    return min(t, n_pad128)


def highway_forward(x_ncl, w_cat, b_cat, *, l_tile=None):
    """Highway stack on x of shape (B, D, L) (conv / NCL layout).

    w_cat : (n, 2D, D) fused weights, b_cat : (n, 2D, 1) fused biases
    (from fuse_highway_params).
    """
    B, D, L = x_ncl.shape
    n, two_d, d_in = w_cat.shape
    assert two_d == 2 * D and d_in == D, "fused weight shape mismatch"

    # Fold batch into the lane axis: (B, D, L) -> (D, B*L); tokens on lanes.
    n_tok = B * L
    x2d = jnp.transpose(x_ncl, (1, 0, 2)).reshape(D, n_tok)

    in_bytes = x2d.dtype.itemsize
    out_bytes = x_ncl.dtype.itemsize
    if l_tile is None:
        l_tile = _pick_token_tile(n_tok, D, in_bytes, out_bytes)
    assert l_tile % 128 == 0, "token tile must be a multiple of 128 lanes"

    # Pad tokens to a multiple of the tile so every store is lane-dense.
    n_pad = -(-n_tok // l_tile) * l_tile
    if n_pad != n_tok:
        x2d = jnp.pad(x2d, ((0, 0), (0, n_pad - n_tok)))

    # Resident-weight VMEM sanity: keep well under the smallest default scoped
    # limit (v5e 16 MiB).  TODO(synk): for very large n*D^2, fall back to a
    # streamed per-layer weight axis instead of resident weights.
    w_bytes = 2 * w_cat.size * w_cat.dtype.itemsize         # (conservative x2)
    tile_bytes = D * l_tile * (2 * in_bytes + 2 * out_bytes + 4)
    assert w_bytes + tile_bytes < (14 << 20), (
        "weight stack + tiles exceed the conservative VMEM budget; "
        "use bf16 weights, a smaller l_tile, or a streaming variant")

    kernel = functools.partial(_highway_kernel, size=D, n_layers=n)

    out2d = pl.pallas_call(
        kernel,
        out_shape=jax.ShapeDtypeStruct((D, n_pad), x_ncl.dtype),
        grid=(n_pad // l_tile,),
        in_specs=[
            # One lane-dense token tile per grid step.
            pl.BlockSpec((D, l_tile), lambda t: (0, t)),
            # Full weight / bias stacks, constant block index -> fetched once,
            # resident in VMEM across all grid steps.
            pl.BlockSpec((n, 2 * D, D), lambda t: (0, 0, 0)),
            pl.BlockSpec((n, 2 * D, 1), lambda t: (0, 0, 0)),
        ],
        out_specs=pl.BlockSpec((D, l_tile), lambda t: (0, t)),
        compiler_params=pltpu.CompilerParams(
            dimension_semantics=("parallel",)),
    )(x2d, w_cat, b_cat)

    out = out2d[:, :n_tok].reshape(D, B, L)
    return jnp.transpose(out, (1, 0, 2))                     # back to (B, D, L)


def _reference(x_ncl, w_lin, b_lin, w_gate, b_gate):
    """Pure-JAX reference mirroring the PyTorch module exactly."""
    x = jnp.transpose(x_ncl, (0, 2, 1))                      # (B, L, D)
    for i in range(w_lin.shape[0]):
        gate = jax.nn.sigmoid(x @ w_gate[i].T + b_gate[i])
        nl = jnp.maximum(x @ w_lin[i].T + b_lin[i], 0.0)
        x = gate * nl + (1.0 - gate) * x
    return jnp.transpose(x, (0, 2, 1))


if __name__ == "__main__":
    B, D, L = 2, 32, 8       # D = config.connector_dim (synthetic small shapes)
    n_layers = 2

    key = jax.random.PRNGKey(0)
    kx, kwl, kbl, kwg, kbg = jax.random.split(key, 5)

    # PyTorch Linear default init: U(-1/sqrt(D), 1/sqrt(D)); weights in (out, in).
    bound = 1.0 / (D ** 0.5)
    x = jax.random.normal(kx, (B, D, L), dtype=jnp.float32)
    w_lin = jax.random.uniform(kwl, (n_layers, D, D), jnp.float32, -bound, bound)
    b_lin = jax.random.uniform(kbl, (n_layers, D), jnp.float32, -bound, bound)
    w_gate = jax.random.uniform(kwg, (n_layers, D, D), jnp.float32, -bound, bound)
    b_gate = jax.random.uniform(kbg, (n_layers, D), jnp.float32, -bound, bound)

    # Fuse once (hoisted out of the per-call path).  For v6e/v7x throughput,
    # pass matmul_dtype=jnp.bfloat16; kept f32 here for a tight correctness check.
    w_cat, b_cat = fuse_highway_params(w_lin, b_lin, w_gate, b_gate)

    out = highway_forward(x, w_cat, b_cat)
    out = jax.block_until_ready(out)

    ref = _reference(x, w_lin, b_lin, w_gate, b_gate)
    assert out.shape == (B, D, L)
    assert jnp.allclose(out, ref, atol=1e-5, rtol=1e-5), "mismatch vs reference"

    print("KERNEL_OK")
</pallas_src>

<mosaic_0001>
module attributes {stable_mosaic.version = 11 : i64} {
  func.func @_highway_kernel(%arg0: i32, %arg1: memref<32x128xf32, #tpu.memory_space<vmem>>, %arg2: memref<2x64x32xf32, #tpu.memory_space<vmem>>, %arg3: memref<2x64x1xf32, #tpu.memory_space<vmem>>, %arg4: memref<32x128xf32, #tpu.memory_space<vmem>>) attributes {dimension_semantics = [#tpu.dimension_semantics<parallel>], iteration_bounds = array<i64: 1>, scalar_prefetch = 0 : i64, scratch_operands = 0 : i64, tpu.core_type = #tpu.core_type<tc>, window_params = [{transform_indices = @transform_0, window_bounds = array<i64: 32, 128>}, {pipeline_mode = #tpu.pipeline_mode<synchronous>, transform_indices = @transform_1, window_bounds = array<i64: 2, 64, 32>}, {pipeline_mode = #tpu.pipeline_mode<synchronous>, transform_indices = @transform_2, window_bounds = array<i64: 2, 64, 1>}, {transform_indices = @transform_3, window_bounds = array<i64: 32, 128>}]} {
    %c0 = arith.constant 0 : index
    %c0_0 = arith.constant 0 : index
    %0 = vector.load %arg1[%c0, %c0_0] : memref<32x128xf32, #tpu.memory_space<vmem>>, vector<32x128xf32>
    %c0_1 = arith.constant 0 : index
    %c0_2 = arith.constant 0 : index
    %c0_3 = arith.constant 0 : index
    %1 = vector.load %arg2[%c0_1, %c0_2, %c0_3] : memref<2x64x32xf32, #tpu.memory_space<vmem>>, vector<1x64x32xf32>
    %2 = vector.shape_cast %1 : vector<1x64x32xf32> to vector<64x32xf32>
    %c0_4 = arith.constant 0 : index
    %c0_5 = arith.constant 0 : index
    %c0_6 = arith.constant 0 : index
    %3 = vector.load %arg3[%c0_4, %c0_5, %c0_6] : memref<2x64x1xf32, #tpu.memory_space<vmem>>, vector<1x64x1xf32>
    %4 = vector.shape_cast %3 : vector<1x64x1xf32> to vector<64x1xf32>
    %cst = arith.constant dense<0.000000e+00> : vector<64x128xf32>
    %5 = tpu.matmul %2, %0, %cst {dimension_numbers = #tpu.dot_dimension_numbers<[1], [0], [0], [1], [0, 0, 1, 1], [], []>} : vector<64x32xf32>, vector<32x128xf32>, vector<64x128xf32> -> vector<64x128xf32>
    %6 = vector.broadcast %4 : vector<64x1xf32> to vector<64x128xf32>
    %7 = arith.addf %5, %6 : vector<64x128xf32>
    %8 = vector.extract_strided_slice %7 {offsets = [0, 0], sizes = [32, 128], strides = [1, 1]} : vector<64x128xf32> to vector<32x128xf32>
    %cst_7 = arith.constant 0.000000e+00 : f32
    %9 = vector.broadcast %cst_7 : f32 to vector<32x128xf32>
    %10 = arith.maximumf %8, %9 : vector<32x128xf32>
    %11 = vector.extract_strided_slice %7 {offsets = [32, 0], sizes = [32, 128], strides = [1, 1]} : vector<64x128xf32> to vector<32x128xf32>
    %12 = arith.negf %11 : vector<32x128xf32>
    %13 = math.exp %12 : vector<32x128xf32>
    %cst_8 = arith.constant 1.000000e+00 : f32
    %14 = vector.broadcast %cst_8 : f32 to vector<32x128xf32>
    %15 = arith.addf %14, %13 : vector<32x128xf32>
    %16 = arith.divf %14, %15 : vector<32x128xf32>
    %17 = arith.subf %10, %0 : vector<32x128xf32>
    %18 = arith.mulf %16, %17 : vector<32x128xf32>
    %19 = arith.addf %0, %18 : vector<32x128xf32>
    %c1 = arith.constant 1 : index
    %c0_9 = arith.constant 0 : index
    %c0_10 = arith.constant 0 : index
    %20 = vector.load %arg2[%c1, %c0_9, %c0_10] : memref<2x64x32xf32, #tpu.memory_space<vmem>>, vector<1x64x32xf32>
    %21 = vector.shape_cast %20 : vector<1x64x32xf32> to vector<64x32xf32>
    %c1_11 = arith.constant 1 : index
    %c0_12 = arith.constant 0 : index
    %c0_13 = arith.constant 0 : index
    %22 = vector.load %arg3[%c1_11, %c0_12, %c0_13] : memref<2x64x1xf32, #tpu.memory_space<vmem>>, vector<1x64x1xf32>
    %23 = vector.shape_cast %22 : vector<1x64x1xf32> to vector<64x1xf32>
    %cst_14 = arith.constant dense<0.000000e+00> : vector<64x128xf32>
    %24 = tpu.matmul %21, %19, %cst_14 {dimension_numbers = #tpu.dot_dimension_numbers<[1], [0], [0], [1], [0, 0, 1, 1], [], []>} : vector<64x32xf32>, vector<32x128xf32>, vector<64x128xf32> -> vector<64x128xf32>
    %25 = vector.broadcast %23 : vector<64x1xf32> to vector<64x128xf32>
    %26 = arith.addf %24, %25 : vector<64x128xf32>
    %27 = vector.extract_strided_slice %26 {offsets = [0, 0], sizes = [32, 128], strides = [1, 1]} : vector<64x128xf32> to vector<32x128xf32>
    %cst_15 = arith.constant 0.000000e+00 : f32
    %28 = vector.broadcast %cst_15 : f32 to vector<32x128xf32>
    %29 = arith.maximumf %27, %28 : vector<32x128xf32>
    %30 = vector.extract_strided_slice %26 {offsets = [32, 0], sizes = [32, 128], strides = [1, 1]} : vector<64x128xf32> to vector<32x128xf32>
    %31 = arith.negf %30 : vector<32x128xf32>
    %32 = math.exp %31 : vector<32x128xf32>
    %cst_16 = arith.constant 1.000000e+00 : f32
    %33 = vector.broadcast %cst_16 : f32 to vector<32x128xf32>
    %34 = arith.addf %33, %32 : vector<32x128xf32>
    %35 = arith.divf %33, %34 : vector<32x128xf32>
    %36 = arith.subf %29, %19 : vector<32x128xf32>
    %37 = arith.mulf %35, %36 : vector<32x128xf32>
    %38 = arith.addf %19, %37 : vector<32x128xf32>
    %c0_17 = arith.constant 0 : index
    %c0_18 = arith.constant 0 : index
    %39 = vector.load %arg4[%c0_17, %c0_18] : memref<32x128xf32, #tpu.memory_space<vmem>>, vector<32x128xf32>
    tpu.vector_store %arg4[%c0_17, %c0_18], %38 {strides = array<i32>} : memref<32x128xf32, #tpu.memory_space<vmem>>, vector<32x128xf32>,
    return
  }
  func.func @transform_0(%arg0: i32) -> (i32, i32) {
    %c0_i32 = arith.constant 0 : i32
    %c0_i32_0 = arith.constant 0 : i32
    return %c0_i32, %arg0 : i32, i32
  }
  func.func @transform_1(%arg0: i32) -> (i32, i32, i32) {
    %c0_i32 = arith.constant 0 : i32
    %c0_i32_0 = arith.constant 0 : i32
    %c0_i32_1 = arith.constant 0 : i32
    %c0_i32_2 = arith.constant 0 : i32
    return %c0_i32, %c0_i32_0, %c0_i32_1 : i32, i32, i32
  }
  func.func @transform_2(%arg0: i32) -> (i32, i32, i32) {
    %c0_i32 = arith.constant 0 : i32
    %c0_i32_0 = arith.constant 0 : i32
    %c0_i32_1 = arith.constant 0 : i32
    %c0_i32_2 = arith.constant 0 : i32
    return %c0_i32, %c0_i32_0, %c0_i32_1 : i32, i32, i32
  }
  func.func @transform_3(%arg0: i32) -> (i32, i32) {
    %c0_i32 = arith.constant 0 : i32
    %c0_i32_0 = arith.constant 0 : i32
    return %c0_i32, %arg0 : i32, i32
  }
}

</mosaic_0001>

<llo_original>
// kernel: tpu_custom_call.1
$region0: #{tpu_custom_call.1}
  #allocation0 [shape = 'u32[]', space=smem, size = 0x4, offset = 0x4, fixed_abs, tag = 'smem constant byte address 0x4 - core index']
  #allocation1 [shape = 'u32[72,128]{1,0:T(1,128)}', space=vmem, size = 0x9000, scoped, tag = 'internal scratch']
  %s0 = inlined_call_operand.vmem [shape: f32[32,128], index: 0, kind: input, shape index: {}]
  %s1 = inlined_call_operand.vmem [shape: f32[2,64,32], index: 1, kind: input, shape index: {}]
  %s2 = inlined_call_operand.vmem [shape: f32[2,64,1], index: 2, kind: input, shape index: {}]
  %s3 = inlined_call_operand.hbm [shape: f32[32,128], index: 3, kind: output, shape index: {}]
  %s4 = sld [smem:[#allocation0]]
  $region22: #{tpu_custom_call.1} parent=0
    _
  %s6 = ssub.s32 1, %s4
  %s7 = scalar_select 0, %s6, %s4
  $region1: #{tpu_custom_call.1} parent=0
    #allocation2 [shape = 'u8[16384]{0}', space=vmem, size = 0x4000, scoped, tag = 'output window, operand 0, single buffered']
    #allocation3 [shape = 's32[1]{0}', space=sflag, size = 0x4, scoped, tag = 'scoped memory for tpu_custom_call.1']
    %8 = vsyncpa [#allocation3], 0
    // Predicated region
    $region2: #{tpu_custom_call.1} parent=1 // pred_check
      _
    $region3: #{tpu_custom_call.1} parent=1 // pred_check_branch
      %10 = sbr.rel (0) target = $region5
    $region4: #{tpu_custom_call.1} parent=1 // pred_region
      _
    $region5: #{tpu_custom_call.1} parent=1 // pred_fallthru
      _
    // Predicated region
    $region6: #{tpu_custom_call.1} parent=1 // pred_check
      _
    $region7: #{tpu_custom_call.1} parent=1 // pred_check_branch
      %12 = sbr.rel (0) target = $region9
    $region8: #{tpu_custom_call.1} parent=1 // pred_region
      _
    $region9: #{tpu_custom_call.1} parent=1 // pred_fallthru
      _
    // Predicated region
    $region10: #{tpu_custom_call.1} parent=1 // pred_check
      _
    $region11: #{tpu_custom_call.1} parent=1 // pred_check_branch
      %14 = sbr.rel (0) target = $region13
    $region12: #{tpu_custom_call.1} parent=1 // pred_region
      _
    $region13: #{tpu_custom_call.1} parent=1 // pred_fallthru
      _
    %v15 = vld [vmem:[%s0] sm:$0xff]
    %v16 = vld [vmem:[%s0 + $0x8] sm:$0xff]
    %v17 = vld [vmem:[%s0 + $0x10] sm:$0xff]
    %v18 = vld [vmem:[%s0 + $0x18] sm:$0xff]
    %v19 = vld [vmem:[%s1] sm:$0xff]
    %v20 = vld [vmem:[%s1 + $0x8] sm:$0xff]
    %v21 = vld [vmem:[%s1 + $0x10] sm:$0xff]
    %v22 = vld [vmem:[%s1 + $0x18] sm:$0xff]
    %v23 = vld [vmem:[%s1 + $0x20] sm:$0xff]
    %v24 = vld [vmem:[%s1 + $0x28] sm:$0xff]
    %v25 = vld [vmem:[%s1 + $0x30] sm:$0xff]
    %v26 = vld [vmem:[%s1 + $0x38] sm:$0xff]
    %v27 = vld [vmem:[%s2] sm:$0xff]
    %v28 = vld [vmem:[%s2 + $0x8] sm:$0xff]
    %v29 = vld [vmem:[%s2 + $0x10] sm:$0xff]
    %v30 = vld [vmem:[%s2 + $0x18] sm:$0xff]
    %v31 = vld [vmem:[%s2 + $0x20] sm:$0xff]
    %v32 = vld [vmem:[%s2 + $0x28] sm:$0xff]
    %v33 = vld [vmem:[%s2 + $0x30] sm:$0xff]
    %v34 = vld [vmem:[%s2 + $0x38] sm:$0xff]
    %36 = vset.pattern.permute.xlu0 0
    %37 = vperm.xlu0 %36, %v27
    %v38 = vpop.permute.xlu0 %37
    %41 = vset.pattern.permute.xlu0 0
    %42 = vperm.xlu0 %41, %v28
    %v43 = vpop.permute.xlu0 %42
    %46 = vset.pattern.permute.xlu0 0
    %47 = vperm.xlu0 %46, %v29
    %v48 = vpop.permute.xlu0 %47
    %51 = vset.pattern.permute.xlu0 0
    %52 = vperm.xlu0 %51, %v30
    %v53 = vpop.permute.xlu0 %52
    %56 = vset.pattern.permute.xlu0 0
    %57 = vperm.xlu0 %56, %v31
    %v58 = vpop.permute.xlu0 %57
    %61 = vset.pattern.permute.xlu0 0
    %62 = vperm.xlu0 %61, %v32
    %v63 = vpop.permute.xlu0 %62
    %66 = vset.pattern.permute.xlu0 0
    %67 = vperm.xlu0 %66, %v33
    %v68 = vpop.permute.xlu0 %67
    %71 = vset.pattern.permute.xlu0 0
    %72 = vperm.xlu0 %71, %v34
    %v73 = vpop.permute.xlu0 %72
    %vm75 = vcmask 261120
    %v77 = vsel %vm75, %v19, 0
    %v80 = vsel %vm75, %v20, 0
    %v83 = vsel %vm75, %v21, 0
    %v86 = vsel %vm75, %v22, 0
    %v89 = vsel %vm75, %v23, 0
    %v92 = vsel %vm75, %v24, 0
    %v95 = vsel %vm75, %v25, 0
    %v98 = vsel %vm75, %v26, 0
    %100 = vmatpush.msra.mxu0 0.0
    %101 = vmatpush.msra.mxu0 0.0
    %102 = vmatpush.msra.mxu0 0.0
    %103 = vmatpush.msra.mxu0 0.0
    %104 = vmatpush.msra.mxu0 0.0
    %105 = vmatpush.msra.mxu0 0.0
    %106 = vmatpush.msra.mxu0 0.0
    %107 = vmatpush.msra.mxu0 0.0
    %108 = vmatpush.msra.mxu0 0.0
    %109 = vmatpush.msra.mxu0 0.0
    %110 = vmatpush.msra.mxu0 0.0
    %111 = vmatpush.msra.mxu0 0.0
    %112 = vmatpush.msra.mxu0 %v18
    %113 = vmatpush.msra.mxu0 %v17
    %114 = vmatpush.msra.mxu0 %v16
    %115 = vmatpush.msra.mxu0 %v15
    %116 = vmatmul.f32.gmra.mxu0 %v77
    %v117 = vpop.f32.mrf.mxu0
    %v118 = vadd.f32 %v38, %v117
    %119 = vmatmul.f32.gmra.mxu0 %v80
    %v120 = vpop.f32.mrf.mxu0
    %v121 = vadd.f32 %v43, %v120
    %122 = vmatmul.f32.gmra.mxu0 %v83
    %v123 = vpop.f32.mrf.mxu0
    %v124 = vadd.f32 %v48, %v123
    %125 = vmatmul.f32.gmra.mxu0 %v86
    %v126 = vpop.f32.mrf.mxu0
    %v127 = vadd.f32 %v53, %v126
    %128 = vmatmul.f32.gmra.mxu0 %v89
    %v129 = vpop.f32.mrf.mxu0
    %v130 = vadd.f32 %v58, %v129
    %131 = vmatmul.f32.gmra.mxu0 %v92
    %v132 = vpop.f32.mrf.mxu0
    %v133 = vadd.f32 %v63, %v132
    %134 = vmatmul.f32.gmra.mxu0 %v95
    %v135 = vpop.f32.mrf.mxu0
    %v136 = vadd.f32 %v68, %v135
    %137 = vmatmul.f32.gmra.mxu0 %v98
    %v138 = vpop.f32.mrf.mxu0
    %v139 = vadd.f32 %v73, %v138
    %140 = vdwg.mxu0
    %v141 = vmax.f32 %v118, 0.0
    %v142 = vmax.f32 %v121, 0.0
    %v143 = vmax.f32 %v124, 0.0
    %v144 = vmax.f32 %v127, 0.0
    %v145 = vxor.u32 %v130, 2147483648
    %v146 = vxor.u32 %v133, 2147483648
    %v147 = vxor.u32 %v136, 2147483648
    %v148 = vxor.u32 %v139, 2147483648
    %v149 = vmul.f32 %v145, 1.442695
    %v150 = vpow.pop %v149
    %v151 = vmul.f32 %v146, 1.442695
    %v152 = vpow.pop %v151
    %v153 = vmul.f32 %v147, 1.442695
    %v154 = vpow.pop %v153
    %v155 = vmul.f32 %v148, 1.442695
    %v156 = vpow.pop %v155
    %v157 = vadd.f32 %v150, 1.0
    %v158 = vadd.f32 %v152, 1.0
    %v159 = vadd.f32 %v154, 1.0
    %v160 = vadd.f32 %v156, 1.0
    %v161 = vrcp.pop %v157
    %v162 = vmul.f32 %v157, %v161
    %v163 = vsub.f32 1.0, %v162
    %v164 = vmul.f32 %v161, %v163
    %v165 = vadd.f32 %v161, %v164
    %vm166 = vweird.f32 %v157
    %vm167 = vweird.f32 %v161
    %vm168 = vmor %vm166, %vm167
    %v169 = vsel %vm168, %v161, %v165
    %v170 = vand.u32 2147483647, %v157
    %vm171 = vcmp.eq.f32.partialorder %v170, 8.507059e+37
    %v172 = vand.u32 %v157, 2147483648
    %v173 = vor.u32 1.1754944e-38, %v172
    %v174 = vsel %vm171, %v173, %v169
    %v175 = vmul.f32 1.0, %v174
    %v176 = vrcp.pop %v158
    %v177 = vmul.f32 %v158, %v176
    %v178 = vsub.f32 1.0, %v177
    %v179 = vmul.f32 %v176, %v178
    %v180 = vadd.f32 %v176, %v179
    %vm181 = vweird.f32 %v158
    %vm182 = vweird.f32 %v176
    %vm183 = vmor %vm181, %vm182
    %v184 = vsel %vm183, %v176, %v180
    %v185 = vand.u32 2147483647, %v158
    %vm186 = vcmp.eq.f32.partialorder %v185, 8.507059e+37
    %v187 = vand.u32 %v158, 2147483648
    %v188 = vor.u32 1.1754944e-38, %v187
    %v189 = vsel %vm186, %v188, %v184
    %v190 = vmul.f32 1.0, %v189
    %v191 = vrcp.pop %v159
    %v192 = vmul.f32 %v159, %v191
    %v193 = vsub.f32 1.0, %v192
    %v194 = vmul.f32 %v191, %v193
    %v195 = vadd.f32 %v191, %v194
    %vm196 = vweird.f32 %v159
    %vm197 = vweird.f32 %v191
    %vm198 = vmor %vm196, %vm197
    %v199 = vsel %vm198, %v191, %v195
    %v200 = vand.u32 2147483647, %v159
    %vm201 = vcmp.eq.f32.partialorder %v200, 8.507059e+37
    %v202 = vand.u32 %v159, 2147483648
    %v203 = vor.u32 1.1754944e-38, %v202
    %v204 = vsel %vm201, %v203, %v199
    %v205 = vmul.f32 1.0, %v204
    %v206 = vrcp.pop %v160
    %v207 = vmul.f32 %v160, %v206
    %v208 = vsub.f32 1.0, %v207
    %v209 = vmul.f32 %v206, %v208
    %v210 = vadd.f32 %v206, %v209
    %vm211 = vweird.f32 %v160
    %vm212 = vweird.f32 %v206
    %vm213 = vmor %vm211, %vm212
    %v214 = vsel %vm213, %v206, %v210
    %v215 = vand.u32 2147483647, %v160
    %vm216 = vcmp.eq.f32.partialorder %v215, 8.507059e+37
    %v217 = vand.u32 %v160, 2147483648
    %v218 = vor.u32 1.1754944e-38, %v217
    %v219 = vsel %vm216, %v218, %v214
    %v220 = vmul.f32 1.0, %v219
    %v221 = vsub.f32 %v141, %v15
    %v222 = vsub.f32 %v142, %v16
    %v223 = vsub.f32 %v143, %v17
    %v224 = vsub.f32 %v144, %v18
    %v225 = vmul.f32 %v175, %v221
    %v226 = vmul.f32 %v190, %v222
    %v227 = vmul.f32 %v205, %v223
    %v228 = vmul.f32 %v220, %v224
    %v229 = vadd.f32 %v15, %v225
    %v230 = vadd.f32 %v16, %v226
    %v231 = vadd.f32 %v17, %v227
    %v232 = vadd.f32 %v18, %v228
    %s233 = scalar_lea.vmem %s1, 64
    %v234 = vld [vmem:[%s233] sm:$0xff]
    %v235 = vld [vmem:[%s233 + $0x8] sm:$0xff]
    %v236 = vld [vmem:[%s233 + $0x10] sm:$0xff]
    %v237 = vld [vmem:[%s233 + $0x18] sm:$0xff]
    %v238 = vld [vmem:[%s233 + $0x20] sm:$0xff]
    %v239 = vld [vmem:[%s233 + $0x28] sm:$0xff]
    %v240 = vld [vmem:[%s233 + $0x30] sm:$0xff]
    %v241 = vld [vmem:[%s233 + $0x38] sm:$0xff]
    %s242 = scalar_lea.vmem %s2, 64
    %v243 = vld [vmem:[%s242] sm:$0xff]
    %v244 = vld [vmem:[%s242 + $0x8] sm:$0xff]
    %v245 = vld [vmem:[%s242 + $0x10] sm:$0xff]
    %v246 = vld [vmem:[%s242 + $0x18] sm:$0xff]
    %v247 = vld [vmem:[%s242 + $0x20] sm:$0xff]
    %v248 = vld [vmem:[%s242 + $0x28] sm:$0xff]
    %v249 = vld [vmem:[%s242 + $0x30] sm:$0xff]
    %v250 = vld [vmem:[%s242 + $0x38] sm:$0xff]
    %252 = vset.pattern.permute.xlu0 0
    %253 = vperm.xlu0 %252, %v243
    %v254 = vpop.permute.xlu0 %253
    %257 = vset.pattern.permute.xlu0 0
    %258 = vperm.xlu0 %257, %v244
    %v259 = vpop.permute.xlu0 %258
    %262 = vset.pattern.permute.xlu0 0
    %263 = vperm.xlu0 %262, %v245
    %v264 = vpop.permute.xlu0 %263
    %267 = vset.pattern.permute.xlu0 0
    %268 = vperm.xlu0 %267, %v246
    %v269 = vpop.permute.xlu0 %268
    %272 = vset.pattern.permute.xlu0 0
    %273 = vperm.xlu0 %272, %v247
    %v274 = vpop.permute.xlu0 %273
    %277 = vset.pattern.permute.xlu0 0
    %278 = vperm.xlu0 %277, %v248
    %v279 = vpop.permute.xlu0 %278
    %282 = vset.pattern.permute.xlu0 0
    %283 = vperm.xlu0 %282, %v249
    %v284 = vpop.permute.xlu0 %283
    %287 = vset.pattern.permute.xlu0 0
    %288 = vperm.xlu0 %287, %v250
    %v289 = vpop.permute.xlu0 %288
    %v292 = vsel %vm75, %v234, 0
    %v295 = vsel %vm75, %v235, 0
    %v298 = vsel %vm75, %v236, 0
    %v301 = vsel %vm75, %v237, 0
    %v304 = vsel %vm75, %v238, 0
    %v307 = vsel %vm75, %v239, 0
    %v310 = vsel %vm75, %v240, 0
    %v313 = vsel %vm75, %v241, 0
    %315 = vmatpush.msra.mxu0 0.0
    %316 = vmatpush.msra.mxu0 0.0
    %317 = vmatpush.msra.mxu0 0.0
    %318 = vmatpush.msra.mxu0 0.0
    %319 = vmatpush.msra.mxu0 0.0
    %320 = vmatpush.msra.mxu0 0.0
    %321 = vmatpush.msra.mxu0 0.0
    %322 = vmatpush.msra.mxu0 0.0
    %323 = vmatpush.msra.mxu0 0.0
    %324 = vmatpush.msra.mxu0 0.0
    %325 = vmatpush.msra.mxu0 0.0
    %326 = vmatpush.msra.mxu0 0.0
    %327 = vmatpush.msra.mxu0 %v232
    %328 = vmatpush.msra.mxu0 %v231
    %329 = vmatpush.msra.mxu0 %v230
    %330 = vmatpush.msra.mxu0 %v229
    %331 = vmatmul.f32.gmra.mxu0 %v292
    %v332 = vpop.f32.mrf.mxu0
    %v333 = vadd.f32 %v254, %v332
    %334 = vmatmul.f32.gmra.mxu0 %v295
    %v335 = vpop.f32.mrf.mxu0
    %v336 = vadd.f32 %v259, %v335
    %337 = vmatmul.f32.gmra.mxu0 %v298
    %v338 = vpop.f32.mrf.mxu0
    %v339 = vadd.f32 %v264, %v338
    %340 = vmatmul.f32.gmra.mxu0 %v301
    %v341 = vpop.f32.mrf.mxu0
    %v342 = vadd.f32 %v269, %v341
    %343 = vmatmul.f32.gmra.mxu0 %v304
    %v344 = vpop.f32.mrf.mxu0
    %v345 = vadd.f32 %v274, %v344
    %346 = vmatmul.f32.gmra.mxu0 %v307
    %v347 = vpop.f32.mrf.mxu0
    %v348 = vadd.f32 %v279, %v347
    %349 = vmatmul.f32.gmra.mxu0 %v310
    %v350 = vpop.f32.mrf.mxu0
    %v351 = vadd.f32 %v284, %v350
    %352 = vmatmul.f32.gmra.mxu0 %v313
    %v353 = vpop.f32.mrf.mxu0
    %v354 = vadd.f32 %v289, %v353
    %355 = vdwg.mxu0
    %v356 = vmax.f32 %v333, 0.0
    %v357 = vmax.f32 %v336, 0.0
    %v358 = vmax.f32 %v339, 0.0
    %v359 = vmax.f32 %v342, 0.0
    %v360 = vxor.u32 %v345, 2147483648
    %v361 = vxor.u32 %v348, 2147483648
    %v362 = vxor.u32 %v351, 2147483648
    %v363 = vxor.u32 %v354, 2147483648
    %v364 = vmul.f32 %v360, 1.442695
    %v365 = vpow.pop %v364
    %v366 = vmul.f32 %v361, 1.442695
    %v367 = vpow.pop %v366
    %v368 = vmul.f32 %v362, 1.442695
    %v369 = vpow.pop %v368
    %v370 = vmul.f32 %v363, 1.442695
    %v371 = vpow.pop %v370
    %v372 = vadd.f32 %v365, 1.0
    %v373 = vadd.f32 %v367, 1.0
    %v374 = vadd.f32 %v369, 1.0
    %v375 = vadd.f32 %v371, 1.0
    %v376 = vrcp.pop %v372
    %v377 = vmul.f32 %v372, %v376
    %v378 = vsub.f32 1.0, %v377
    %v379 = vmul.f32 %v376, %v378
    %v380 = vadd.f32 %v376, %v379
    %vm381 = vweird.f32 %v372
    %vm382 = vweird.f32 %v376
    %vm383 = vmor %vm381, %vm382
    %v384 = vsel %vm383, %v376, %v380
    %v385 = vand.u32 2147483647, %v372
    %vm386 = vcmp.eq.f32.partialorder %v385, 8.507059e+37
    %v387 = vand.u32 %v372, 2147483648
    %v388 = vor.u32 1.1754944e-38, %v387
    %v389 = vsel %vm386, %v388, %v384
    %v390 = vmul.f32 1.0, %v389
    %v391 = vrcp.pop %v373
    %v392 = vmul.f32 %v373, %v391
    %v393 = vsub.f32 1.0, %v392
    %v394 = vmul.f32 %v391, %v393
    %v395 = vadd.f32 %v391, %v394
    %vm396 = vweird.f32 %v373
    %vm397 = vweird.f32 %v391
    %vm398 = vmor %vm396, %vm397
    %v399 = vsel %vm398, %v391, %v395
    %v400 = vand.u32 2147483647, %v373
    %vm401 = vcmp.eq.f32.partialorder %v400, 8.507059e+37
    %v402 = vand.u32 %v373, 2147483648
    %v403 = vor.u32 1.1754944e-38, %v402
    %v404 = vsel %vm401, %v403, %v399
    %v405 = vmul.f32 1.0, %v404
    %v406 = vrcp.pop %v374
    %v407 = vmul.f32 %v374, %v406
    %v408 = vsub.f32 1.0, %v407
    %v409 = vmul.f32 %v406, %v408
    %v410 = vadd.f32 %v406, %v409
    %vm411 = vweird.f32 %v374
    %vm412 = vweird.f32 %v406
    %vm413 = vmor %vm411, %vm412
    %v414 = vsel %vm413, %v406, %v410
    %v415 = vand.u32 2147483647, %v374
    %vm416 = vcmp.eq.f32.partialorder %v415, 8.507059e+37
    %v417 = vand.u32 %v374, 2147483648
    %v418 = vor.u32 1.1754944e-38, %v417
    %v419 = vsel %vm416, %v418, %v414
    %v420 = vmul.f32 1.0, %v419
    %v421 = vrcp.pop %v375
    %v422 = vmul.f32 %v375, %v421
    %v423 = vsub.f32 1.0, %v422
    %v424 = vmul.f32 %v421, %v423
    %v425 = vadd.f32 %v421, %v424
    %vm426 = vweird.f32 %v375
    %vm427 = vweird.f32 %v421
    %vm428 = vmor %vm426, %vm427
    %v429 = vsel %vm428, %v421, %v425
    %v430 = vand.u32 2147483647, %v375
    %vm431 = vcmp.eq.f32.partialorder %v430, 8.507059e+37
    %v432 = vand.u32 %v375, 2147483648
    %v433 = vor.u32 1.1754944e-38, %v432
    %v434 = vsel %vm431, %v433, %v429
    %v435 = vmul.f32 1.0, %v434
    %v436 = vsub.f32 %v356, %v229
    %v437 = vsub.f32 %v357, %v230
    %v438 = vsub.f32 %v358, %v231
    %v439 = vsub.f32 %v359, %v232
    %v440 = vmul.f32 %v390, %v436
    %v441 = vmul.f32 %v405, %v437
    %v442 = vmul.f32 %v420, %v438
    %v443 = vmul.f32 %v435, %v439
    %v444 = vadd.f32 %v229, %v440
    %v445 = vadd.f32 %v230, %v441
    %v446 = vadd.f32 %v231, %v442
    %v447 = vadd.f32 %v232, %v443
    %448 = vst [vmem:[#allocation2] sm:$0xff] %v444
    %449 = vst [vmem:[#allocation2 + $0x8] sm:$0xff] %v445
    %450 = vst [vmem:[#allocation2 + $0x10] sm:$0xff] %v446
    %451 = vst [vmem:[#allocation2 + $0x18] sm:$0xff] %v447
    // Predicated region
    $region14: #{tpu_custom_call.1} parent=1 // pred_check
      _
    $region15: #{tpu_custom_call.1} parent=1 // pred_check_branch
      %453 = sbr.rel (0) target = $region17
    $region16: #{tpu_custom_call.1} parent=1 // pred_region
      %455 = vsyncadd [#allocation3], 0
      %s456 = sshll.u32 [#allocation2], 4
      %s457 = int_to_ptr.vmem [resolvable:$true] %s456
      %s458 = sshll.u32 %s3, 4
      %s459 = int_to_ptr.hbm [resolvable:$true] %s458
      %464 = dma.vmem_to_hbm [thread:$0]  %s457, 512, %s459, [#allocation3], 128, 128, 8
    $region17: #{tpu_custom_call.1} parent=1 // pred_fallthru
      _
    // Predicated region
    $region18: #{tpu_custom_call.1} parent=1 // pred_check
      _
    $region19: #{tpu_custom_call.1} parent=1 // pred_check_branch
      %466 = sbr.rel (0) target = $region21
    $region20: #{tpu_custom_call.1} parent=1 // pred_region
      %468 = dma.done [#allocation3], 512
    $region21: #{tpu_custom_call.1} parent=1 // pred_fallthru
      _
    %469 = vsyncpa [#allocation3], 1

</llo_original>
